<compile_context>
chip_gen: v6e
topology: v6e:2x2x1
jax: 0.10.0
libtpu: 0.0.40
codegen_flags: <defaults>
</compile_context>

<pallas_src>
import jax
import jax.numpy as jnp
from jax.experimental import pallas as pl
from jax.experimental.pallas import tpu as pltpu


def _round_up(a: int, b: int) -> int:
    return ((a + b - 1) // b) * b


def channelmix_kernel(x_ref, xx_ref, mk_ref, mr_ref, wk_ref, wr_ref, wv_ref,
                      out_ref, acc_ref, xk_ref):
    """One (row-tile, ffn-tile) grid step.

    Grid = (num_row_tiles, num_ffn_tiles).  The FFN axis is the reduction
    axis (last in the grid); acc_ref is the f32 kv accumulator, xk_ref caches
    the key-mixed activations for the whole F sweep of this row tile.
    """
    f = pl.program_id(1)

    @pl.when(f == 0)
    def _init():
        acc_ref[...] = jnp.zeros_like(acc_ref)
        x = x_ref[...]                               # (TN, C), compute dtype
        dxx = xx_ref[...] - x                        # token-shift delta
        xk_ref[...] = x + dxx * mk_ref[...]          # (1, C) broadcasts rows

    # key -> relu -> square for this FFN slab; accumulate the value projection.
    k = jnp.dot(xk_ref[...], wk_ref[...],
                preferred_element_type=jnp.float32)                   # (TN, TF)
    k = jnp.maximum(k, 0.0)
    k = k * k
    acc_ref[...] += jnp.dot(k.astype(wv_ref.dtype), wv_ref[...],
                            preferred_element_type=jnp.float32)       # (TN, C)

    @pl.when(f == pl.num_programs(1) - 1)
    def _finalize():
        x = x_ref[...]
        xr = x + (xx_ref[...] - x) * mr_ref[...]
        r = jax.nn.sigmoid(jnp.dot(xr, wr_ref[...],
                                   preferred_element_type=jnp.float32))
        out_ref[...] = (r * acc_ref[...]).astype(out_ref.dtype)


def channel_mix(x, last_state, time_maa_k, time_maa_r, wk_t, wr_t, wv_t, *,
                tile_n=512, tile_f=512, compute_dtype=None):
    """x: (B, T, C), last_state: (B, C) -> (out (B, T, C), new_state (B, C)).

    Weights are (in, out) matrices (transposed nn.Linear weights).
    compute_dtype=jnp.bfloat16 streams weights/activations in bf16 while
    keeping f32 accumulation; output dtype matches x.dtype.
    """
    B, T, C = x.shape
    Fdim = wk_t.shape[1]
    N = B * T
    out_dtype = x.dtype
    cdt = compute_dtype if compute_dtype is not None else x.dtype

    # Token shift (cheap JAX glue): xx[b, 0] = last_state[b]; xx[b, t] = x[b, t-1].
    # TODO(synk): avoid reading x twice from HBM by expressing the shift with a
    # one-row-overlap index_map / sublane roll instead of materializing xx.
    xx = jnp.concatenate([last_state[:, None, :], x[:, :-1, :]], axis=1)

    x2 = x.reshape(N, C).astype(cdt)
    xx2 = xx.reshape(N, C).astype(cdt)
    mk = time_maa_k.reshape(1, C).astype(cdt)
    mr = time_maa_r.reshape(1, C).astype(cdt)
    wk = wk_t.astype(cdt)
    wr = wr_t.astype(cdt)
    wv = wv_t.astype(cdt)

    # --- tile choice + zero padding (keep block dims (8, 128)-friendly) ---
    if N <= tile_n:
        tn, n_pad = N, N                      # full dim -> no alignment issue
    else:
        tn = max(8, (tile_n // 8) * 8)
        n_pad = _round_up(N, tn)
    if Fdim <= tile_f:
        tf, f_pad = Fdim, Fdim
    else:
        tf = max(128, (tile_f // 128) * 128)
        f_pad = _round_up(Fdim, tf)

    if n_pad != N:
        x2 = jnp.pad(x2, ((0, n_pad - N), (0, 0)))
        xx2 = jnp.pad(xx2, ((0, n_pad - N), (0, 0)))
    if f_pad != Fdim:
        wk = jnp.pad(wk, ((0, 0), (0, f_pad - Fdim)))    # zero cols -> k == 0
        wv = jnp.pad(wv, ((0, f_pad - Fdim), (0, 0)))    # zero rows -> kv += 0

    grid = (n_pad // tn, f_pad // tf)

    # TODO(synk): for very large C (wr = C*C no longer VMEM-resident), stream
    # wr in slabs on its own axis or fold the receptance matmul into a second
    # pallas_call instead of keeping it resident.
    out = pl.pallas_call(
        channelmix_kernel,
        out_shape=jax.ShapeDtypeStruct((n_pad, C), out_dtype),
        grid_spec=pltpu.PrefetchScalarGridSpec(
            num_scalar_prefetch=0,
            grid=grid,
            in_specs=[
                pl.BlockSpec((tn, C), lambda i, f: (i, 0)),   # x row tile (resident over F)
                pl.BlockSpec((tn, C), lambda i, f: (i, 0)),   # shifted row tile
                pl.BlockSpec((1, C), lambda i, f: (0, 0)),    # time_maa_k (resident)
                pl.BlockSpec((1, C), lambda i, f: (0, 0)),    # time_maa_r (resident)
                pl.BlockSpec((C, tf), lambda i, f: (0, f)),   # key W column slab (streams)
                pl.BlockSpec((C, C), lambda i, f: (0, 0)),    # receptance W (resident)
                pl.BlockSpec((tf, C), lambda i, f: (f, 0)),   # value W row slab (streams)
            ],
            out_specs=pl.BlockSpec((tn, C), lambda i, f: (i, 0)),
            scratch_shapes=[
                pltpu.VMEM((tn, C), jnp.float32),  # kv accumulator
                pltpu.VMEM((tn, C), cdt),          # cached xk for this row tile
            ],
        ),
        compiler_params=pltpu.CompilerParams(
            dimension_semantics=("parallel", "arbitrary"),
            vmem_limit_bytes=48 * 1024 * 1024,
        ),
    )(x2, xx2, mk, mr, wk, wr, wv)

    out = out[:N].reshape(B, T, C)
    return out, x[:, -1]


def make_params(layer_id, n_layer, n_embd, dim_ffn, key):
    # Deterministic init mirroring the module's __init__ shapes.
    ratio_1_to_almost0 = 1.0 - layer_id / n_layer
    ddd = jnp.arange(n_embd, dtype=jnp.float32) / n_embd          # i / n_embd
    time_maa_k = (1.0 - jnp.power(ddd, ratio_1_to_almost0)).reshape(1, n_embd)
    time_maa_r = (1.0 - jnp.power(ddd, ratio_1_to_almost0)).reshape(1, n_embd)

    kk, kr, kv = jax.random.split(key, 3)
    # nn.Linear(in, out, bias=False): weight is (out, in); we store transposed.
    bk = 1.0 / jnp.sqrt(n_embd)
    bv = 1.0 / jnp.sqrt(dim_ffn)
    wk_t = jax.random.uniform(kk, (n_embd, dim_ffn), jnp.float32, -bk, bk)
    wr_t = jax.random.uniform(kr, (n_embd, n_embd), jnp.float32, -bk, bk)
    wv_t = jax.random.uniform(kv, (dim_ffn, n_embd), jnp.float32, -bv, bv)
    return time_maa_k, time_maa_r, wk_t, wr_t, wv_t


def reference(x, last_state, time_maa_k, time_maa_r, wk_t, wr_t, wv_t):
    xx = jnp.concatenate([last_state[:, None, :], x[:, :-1, :]], axis=1)
    dxx = xx - x
    xk = x + dxx * time_maa_k[None]
    xr = x + dxx * time_maa_r[None]
    k = jnp.maximum(xk @ wk_t, 0.0) ** 2
    kv = k @ wv_t
    r = jax.nn.sigmoid(xr @ wr_t)
    return r * kv, x[:, -1]


if __name__ == "__main__":
    B, T = 2, 32
    n_embd, dim_ffn = 128, 384
    layer_id, n_layer = 1, 4

    key = jax.random.PRNGKey(0)
    kp, kx, ks = jax.random.split(key, 3)

    params = make_params(layer_id, n_layer, n_embd, dim_ffn, kp)
    x = jax.random.normal(kx, (B, T, n_embd), jnp.float32)
    last_state = jax.random.normal(ks, (B, n_embd), jnp.float32)

    ref_out, ref_state = reference(x, last_state, *params)

    # f32 path; small tiles so the 2-D grid (2 row tiles x 3 FFN tiles) is
    # actually exercised at demo sizes.  Production defaults are 512 / 512.
    out, new_state = channel_mix(x, last_state, *params, tile_n=32, tile_f=128)
    out = jax.block_until_ready(out)
    new_state = jax.block_until_ready(new_state)
    assert out.shape == (B, T, n_embd)
    assert new_state.shape == (B, n_embd)
    assert jnp.allclose(out, ref_out, atol=1e-4, rtol=1e-4)
    assert jnp.allclose(new_state, ref_state)

    # Single-tile path (blocks == full dims; exercises the no-padding branch).
    out_full, _ = channel_mix(x, last_state, *params)   # default big tiles
    out_full = jax.block_until_ready(out_full)
    assert jnp.allclose(out_full, ref_out, atol=1e-4, rtol=1e-4)

    # bf16 compute path (production config): bf16 streams, f32 accumulation.
    out_bf, _ = channel_mix(x, last_state, *params, tile_n=32, tile_f=128,
                            compute_dtype=jnp.bfloat16)
    out_bf = jax.block_until_ready(out_bf)
    assert out_bf.dtype == x.dtype
    assert jnp.allclose(out_bf, ref_out, atol=1e-1, rtol=1e-1)

    print("KERNEL_OK")
</pallas_src>

<mosaic_0001>
module attributes {stable_mosaic.version = 11 : i64} {
  func.func @channelmix_kernel(%arg0: i32, %arg1: i32, %arg2: memref<32x128xf32, #tpu.memory_space<vmem>>, %arg3: memref<32x128xf32, #tpu.memory_space<vmem>>, %arg4: memref<1x128xf32, #tpu.memory_space<vmem>>, %arg5: memref<1x128xf32, #tpu.memory_space<vmem>>, %arg6: memref<128x128xf32, #tpu.memory_space<vmem>>, %arg7: memref<128x128xf32, #tpu.memory_space<vmem>>, %arg8: memref<128x128xf32, #tpu.memory_space<vmem>>, %arg9: memref<32x128xf32, #tpu.memory_space<vmem>>, %arg10: memref<32x128xf32, #tpu.memory_space<vmem>>, %arg11: memref<32x128xf32, #tpu.memory_space<vmem>>) attributes {dimension_semantics = [#tpu.dimension_semantics<parallel>, #tpu.dimension_semantics<arbitrary>], iteration_bounds = array<i64: 2, 3>, scalar_prefetch = 0 : i64, scratch_operands = 2 : i64, tpu.core_type = #tpu.core_type<tc>, window_params = [{transform_indices = @transform_0, window_bounds = array<i64: 32, 128>}, {transform_indices = @transform_1, window_bounds = array<i64: 32, 128>}, {pipeline_mode = #tpu.pipeline_mode<synchronous>, transform_indices = @transform_2, window_bounds = array<i64: 1, 128>}, {pipeline_mode = #tpu.pipeline_mode<synchronous>, transform_indices = @transform_3, window_bounds = array<i64: 1, 128>}, {transform_indices = @transform_4, window_bounds = array<i64: 128, 128>}, {pipeline_mode = #tpu.pipeline_mode<synchronous>, transform_indices = @transform_5, window_bounds = array<i64: 128, 128>}, {transform_indices = @transform_6, window_bounds = array<i64: 128, 128>}, {transform_indices = @transform_7, window_bounds = array<i64: 32, 128>}]} {
    %c0_i32 = arith.constant 0 : i32
    %0 = arith.cmpi eq, %arg1, %c0_i32 : i32
    %1 = arith.extui %0 : i1 to i32
    %c0_i32_0 = arith.constant 0 : i32
    %2 = arith.cmpi ne, %1, %c0_i32_0 : i32
    scf.if %2 {
      %cst_13 = arith.constant 0.000000e+00 : f32
      %17 = vector.broadcast %cst_13 : f32 to vector<32x128xf32>
      %c0_14 = arith.constant 0 : index
      %c0_15 = arith.constant 0 : index
      %18 = vector.load %arg10[%c0_14, %c0_15] : memref<32x128xf32, #tpu.memory_space<vmem>>, vector<32x128xf32>
      tpu.vector_store %arg10[%c0_14, %c0_15], %17 {strides = array<i32>} : memref<32x128xf32, #tpu.memory_space<vmem>>, vector<32x128xf32>,
      %c0_16 = arith.constant 0 : index
      %c0_17 = arith.constant 0 : index
      %19 = vector.load %arg2[%c0_16, %c0_17] : memref<32x128xf32, #tpu.memory_space<vmem>>, vector<32x128xf32>
      %c0_18 = arith.constant 0 : index
      %c0_19 = arith.constant 0 : index
      %20 = vector.load %arg3[%c0_18, %c0_19] : memref<32x128xf32, #tpu.memory_space<vmem>>, vector<32x128xf32>
      %21 = arith.subf %20, %19 : vector<32x128xf32>
      %c0_20 = arith.constant 0 : index
      %c0_21 = arith.constant 0 : index
      %22 = vector.load %arg4[%c0_20, %c0_21] : memref<1x128xf32, #tpu.memory_space<vmem>>, vector<1x128xf32>
      %23 = vector.broadcast %22 : vector<1x128xf32> to vector<32x128xf32>
      %24 = arith.mulf %21, %23 : vector<32x128xf32>
      %25 = arith.addf %19, %24 : vector<32x128xf32>
      %c0_22 = arith.constant 0 : index
      %c0_23 = arith.constant 0 : index
      %26 = vector.load %arg11[%c0_22, %c0_23] : memref<32x128xf32, #tpu.memory_space<vmem>>, vector<32x128xf32>
      tpu.vector_store %arg11[%c0_22, %c0_23], %25 {strides = array<i32>} : memref<32x128xf32, #tpu.memory_space<vmem>>, vector<32x128xf32>,
    } else {
    }
    %c0 = arith.constant 0 : index
    %c0_1 = arith.constant 0 : index
    %3 = vector.load %arg11[%c0, %c0_1] : memref<32x128xf32, #tpu.memory_space<vmem>>, vector<32x128xf32>
    %c0_2 = arith.constant 0 : index
    %c0_3 = arith.constant 0 : index
    %4 = vector.load %arg6[%c0_2, %c0_3] : memref<128x128xf32, #tpu.memory_space<vmem>>, vector<128x128xf32>
    %cst = arith.constant dense<0.000000e+00> : vector<32x128xf32>
    %5 = tpu.matmul %3, %4, %cst {dimension_numbers = #tpu.dot_dimension_numbers<[1], [0], [0], [1], [0, 0, 1, 1], [], []>} : vector<32x128xf32>, vector<128x128xf32>, vector<32x128xf32> -> vector<32x128xf32>
    %cst_4 = arith.constant 0.000000e+00 : f32
    %6 = vector.broadcast %cst_4 : f32 to vector<32x128xf32>
    %7 = arith.maximumf %5, %6 : vector<32x128xf32>
    %8 = arith.mulf %7, %7 : vector<32x128xf32>
    %c0_5 = arith.constant 0 : index
    %c0_6 = arith.constant 0 : index
    %9 = vector.load %arg10[%c0_5, %c0_6] : memref<32x128xf32, #tpu.memory_space<vmem>>, vector<32x128xf32>
    %c0_7 = arith.constant 0 : index
    %c0_8 = arith.constant 0 : index
    %10 = vector.load %arg8[%c0_7, %c0_8] : memref<128x128xf32, #tpu.memory_space<vmem>>, vector<128x128xf32>
    %cst_9 = arith.constant dense<0.000000e+00> : vector<32x128xf32>
    %11 = tpu.matmul %8, %10, %cst_9 {dimension_numbers = #tpu.dot_dimension_numbers<[1], [0], [0], [1], [0, 0, 1, 1], [], []>} : vector<32x128xf32>, vector<128x128xf32>, vector<32x128xf32> -> vector<32x128xf32>
    %12 = arith.addf %9, %11 : vector<32x128xf32>
    %c0_10 = arith.constant 0 : index
    %c0_11 = arith.constant 0 : index
    %13 = vector.load %arg10[%c0_10, %c0_11] : memref<32x128xf32, #tpu.memory_space<vmem>>, vector<32x128xf32>
    tpu.vector_store %arg10[%c0_10, %c0_11], %12 {strides = array<i32>} : memref<32x128xf32, #tpu.memory_space<vmem>>, vector<32x128xf32>,
    %c2_i32 = arith.constant 2 : i32
    %14 = arith.cmpi eq, %arg1, %c2_i32 : i32
    %15 = arith.extui %14 : i1 to i32
    %c0_i32_12 = arith.constant 0 : i32
    %16 = arith.cmpi ne, %15, %c0_i32_12 : i32
    scf.if %16 {
      %c0_13 = arith.constant 0 : index
      %c0_14 = arith.constant 0 : index
      %17 = vector.load %arg2[%c0_13, %c0_14] : memref<32x128xf32, #tpu.memory_space<vmem>>, vector<32x128xf32>
      %c0_15 = arith.constant 0 : index
      %c0_16 = arith.constant 0 : index
      %18 = vector.load %arg3[%c0_15, %c0_16] : memref<32x128xf32, #tpu.memory_space<vmem>>, vector<32x128xf32>
      %19 = arith.subf %18, %17 : vector<32x128xf32>
      %c0_17 = arith.constant 0 : index
      %c0_18 = arith.constant 0 : index
      %20 = vector.load %arg5[%c0_17, %c0_18] : memref<1x128xf32, #tpu.memory_space<vmem>>, vector<1x128xf32>
      %21 = vector.broadcast %20 : vector<1x128xf32> to vector<32x128xf32>
      %22 = arith.mulf %19, %21 : vector<32x128xf32>
      %23 = arith.addf %17, %22 : vector<32x128xf32>
      %c0_19 = arith.constant 0 : index
      %c0_20 = arith.constant 0 : index
      %24 = vector.load %arg7[%c0_19, %c0_20] : memref<128x128xf32, #tpu.memory_space<vmem>>, vector<128x128xf32>
      %cst_21 = arith.constant dense<0.000000e+00> : vector<32x128xf32>
      %25 = tpu.matmul %23, %24, %cst_21 {dimension_numbers = #tpu.dot_dimension_numbers<[1], [0], [0], [1], [0, 0, 1, 1], [], []>} : vector<32x128xf32>, vector<128x128xf32>, vector<32x128xf32> -> vector<32x128xf32>
      %26 = arith.negf %25 : vector<32x128xf32>
      %27 = math.exp %26 : vector<32x128xf32>
      %cst_22 = arith.constant 1.000000e+00 : f32
      %28 = vector.broadcast %cst_22 : f32 to vector<32x128xf32>
      %29 = arith.addf %28, %27 : vector<32x128xf32>
      %30 = arith.divf %28, %29 : vector<32x128xf32>
      %c0_23 = arith.constant 0 : index
      %c0_24 = arith.constant 0 : index
      %31 = vector.load %arg10[%c0_23, %c0_24] : memref<32x128xf32, #tpu.memory_space<vmem>>, vector<32x128xf32>
      %32 = arith.mulf %30, %31 : vector<32x128xf32>
      %c0_25 = arith.constant 0 : index
      %c0_26 = arith.constant 0 : index
      %33 = vector.load %arg9[%c0_25, %c0_26] : memref<32x128xf32, #tpu.memory_space<vmem>>, vector<32x128xf32>
      tpu.vector_store %arg9[%c0_25, %c0_26], %32 {strides = array<i32>} : memref<32x128xf32, #tpu.memory_space<vmem>>, vector<32x128xf32>,
    } else {
    }
    return
  }
  func.func @transform_0(%arg0: i32, %arg1: i32) -> (i32, i32) {
    %c0_i32 = arith.constant 0 : i32
    %c0_i32_0 = arith.constant 0 : i32
    return %arg0, %c0_i32 : i32, i32
  }
  func.func @transform_1(%arg0: i32, %arg1: i32) -> (i32, i32) {
    %c0_i32 = arith.constant 0 : i32
    %c0_i32_0 = arith.constant 0 : i32
    return %arg0, %c0_i32 : i32, i32
  }
  func.func @transform_2(%arg0: i32, %arg1: i32) -> (i32, i32) {
    %c0_i32 = arith.constant 0 : i32
    %c0_i32_0 = arith.constant 0 : i32
    %c0_i32_1 = arith.constant 0 : i32
    return %c0_i32, %c0_i32_0 : i32, i32
  }
  func.func @transform_3(%arg0: i32, %arg1: i32) -> (i32, i32) {
    %c0_i32 = arith.constant 0 : i32
    %c0_i32_0 = arith.constant 0 : i32
    %c0_i32_1 = arith.constant 0 : i32
    return %c0_i32, %c0_i32_0 : i32, i32
  }
  func.func @transform_4(%arg0: i32, %arg1: i32) -> (i32, i32) {
    %c0_i32 = arith.constant 0 : i32
    %c0_i32_0 = arith.constant 0 : i32
    return %c0_i32, %arg1 : i32, i32
  }
  func.func @transform_5(%arg0: i32, %arg1: i32) -> (i32, i32) {
    %c0_i32 = arith.constant 0 : i32
    %c0_i32_0 = arith.constant 0 : i32
    %c0_i32_1 = arith.constant 0 : i32
    return %c0_i32, %c0_i32_0 : i32, i32
  }
  func.func @transform_6(%arg0: i32, %arg1: i32) -> (i32, i32) {
    %c0_i32 = arith.constant 0 : i32
    %c0_i32_0 = arith.constant 0 : i32
    return %arg1, %c0_i32 : i32, i32
  }
  func.func @transform_7(%arg0: i32, %arg1: i32) -> (i32, i32) {
    %c0_i32 = arith.constant 0 : i32
    %c0_i32_0 = arith.constant 0 : i32
    return %arg0, %c0_i32 : i32, i32
  }
}

</mosaic_0001>

<llo_original>
// kernel: tpu_custom_call.1
$region0: #{tpu_custom_call.1}
  #allocation0 [shape = 'u32[]', space=smem, size = 0x4, offset = 0x4, fixed_abs, tag = 'smem constant byte address 0x4 - core index']
  #allocation1 [shape = 'u32[144,128]{1,0:T(1,128)}', space=vmem, size = 0x12000, scoped, tag = 'internal scratch']
  #allocation2 [shape = 'f32[32,128]{1,0:T(8,128)}', space=vmem, size = 0x4000, scoped, tag = 'scratch operand']
  #allocation3 [shape = 'f32[32,128]{1,0:T(8,128)}', space=vmem, size = 0x4000, scoped, tag = 'scratch operand']
  %s0 = inlined_call_operand.hbm [shape: f32[64,128], index: 0, kind: input, shape index: {}]
  %s1 = inlined_call_operand.hbm [shape: f32[64,128], index: 1, kind: input, shape index: {}]
  %s2 = inlined_call_operand.vmem [shape: f32[1,128], index: 2, kind: input, shape index: {}]
  %s3 = inlined_call_operand.vmem [shape: f32[1,128], index: 3, kind: input, shape index: {}]
  %s4 = inlined_call_operand.hbm [shape: f32[128,384], index: 4, kind: input, shape index: {}]
  %s5 = inlined_call_operand.hbm [shape: f32[128,128], index: 5, kind: input, shape index: {}]
  %s6 = inlined_call_operand.hbm [shape: f32[384,128], index: 6, kind: input, shape index: {}]
  %s7 = inlined_call_operand.hbm [shape: f32[64,128], index: 7, kind: output, shape index: {}]
  %s8 = sld [smem:[#allocation0]]
  $region89: #{tpu_custom_call.1} parent=0
    _
  %s10 = ssub.s32 1, %s8
  %s11 = scalar_select 0, %s10, %s8
  $region1: #{tpu_custom_call.1} parent=0
    #allocation4 [shape = 'u8[32768]{0}', space=vmem, size = 0x8000, scoped, tag = 'input window, operand 0']
    #allocation5 [shape = 's32[2]{0}', space=sflag, size = 0x8, scoped, tag = 'scoped memory for tpu_custom_call.1']
    #allocation6 [shape = 's32[2]{0}', space=sflag, size = 0x8, scoped, tag = 'scoped memory for tpu_custom_call.1']
    #allocation7 [shape = 'u8[32768]{0}', space=vmem, size = 0x8000, scoped, tag = 'input window, operand 1']
    #allocation8 [shape = 's32[2]{0}', space=sflag, size = 0x8, scoped, tag = 'scoped memory for tpu_custom_call.1']
    #allocation9 [shape = 'u8[131072]{0}', space=vmem, size = 0x20000, scoped, tag = 'input window, operand 4']
    #allocation10 [shape = 'u8[65536]{0}', space=vmem, size = 0x10000, scoped, tag = 'input window, operand 5, single buffered']
    #allocation11 [shape = 's32[1]{0}', space=sflag, size = 0x4, scoped, tag = 'scoped memory for tpu_custom_call.1']
    #allocation12 [shape = 'u8[131072]{0}', space=vmem, size = 0x20000, scoped, tag = 'input window, operand 6']
    #allocation13 [shape = 'u8[32768]{0}', space=vmem, size = 0x8000, scoped, tag = 'output window, operand 0']
    %12 = vsyncpa [#allocation5], 0
    %s13 = scalar_lea.sflag [#allocation5], 1
    %14 = vsyncpa %s13, 0
    %15 = vsyncpa [#allocation8], 0
    %s16 = scalar_lea.sflag [#allocation8], 1
    %17 = vsyncpa %s16, 0
    %18 = vsyncpa [#allocation11], 0
    %19 = vsyncpa [#allocation6], 0
    %s20 = scalar_lea.sflag [#allocation6], 1
    %21 = vsyncpa %s20, 0
    loop: start=0, step=1, limit=8
    $region2: #{tpu_custom_call.1} parent=1 // loop_pre_header
      _
    $region3: #{tpu_custom_call.1} parent=1 // loop_header
      %s23 = sphi 0, %s27
      %p24 = scmp.ge.s32.totalorder %s23, 8
      %s30 = sphi 0, %s42
      %s31 = sphi 0, %s38
      %s32 = sphi 0, %s30
      %s33 = sphi 0, %s31
      %s34 = sphi 0, %s32
      %s35 = sphi 0, %s33
      %s45 = sphi 0, %s47
      %s48 = sphi 0, %s45
      %s49 = sphi 0, %s48
      %s65 = sphi 0, %s49
      %s71 = sphi 0, %s73
      %s74 = sphi 0, %s71
      %s75 = sphi 0, %s74
      %s91 = sphi 0, %s75
      %s95 = sphi 0, %s95
      %s97 = sphi 0, %s95
      %s98 = sphi 0, %s97
      %s112 = sphi 0, %s98
      %s116 = sphi 0, %s116
      %s118 = sphi 0, %s116
      %s119 = sphi 0, %s118
      %s133 = sphi 0, %s119
      %s139 = sphi 0, %s141
      %s142 = sphi 0, %s139
      %s143 = sphi 0, %s142
      %s159 = sphi 0, %s143
      %s163 = sphi 0, %s163
      %s165 = sphi 0, %s163
      %s166 = sphi 0, %s165
      %s180 = sphi 0, %s166
      %s186 = sphi 0, %s188
      %s189 = sphi 0, %s186
      %s190 = sphi 0, %s189
      %s206 = sphi 0, %s190
      %s212 = sphi 0, %s214
      %s215 = sphi 0, %s212
      %s216 = sphi 0, %s215
      %s232 = sphi 0, %s216
    $region4: #{tpu_custom_call.1} parent=1 // loop_header_branch
      %26 = sbr.rel (%p24) target = $region8
    $region5: #{tpu_custom_call.1} parent=1 // loop_body
      %s28 = ssub.s32 %s23, 1
      %s29 = ssub.s32 %s23, 2
      %s36 = sadd.s32 1, %s31
      %p37 = scmp.ge.s32.totalorder %s36, 3
      %s38 = scalar_select %p37, 0, %s36
      %s39 = sadd.s32 1, %s30
      %s40 = scalar_select %p37, %s39, %s30
      %p41 = scmp.ge.s32.totalorder %s40, 2
      %s42 = scalar_select %p41, 0, %s40
      %s43 = ssub.s32 %s30, %s42
      %p44 = scmp.eq.s32.totalorder %s43, 0
      %s46 = sadd.s32 %s45, 1
      %s47 = scalar_select %p44, %s45, %s46
      %p50 = pneg %p44
      %p51 = scmp.eq.s32.totalorder %s23, 5
      %p52 = por %p50, %p51
      %p53 = scmp.ne.s32.totalorder %s45, %s48
      %p54 = scmp.eq.s32.totalorder %s23, 0
      %p55 = por %p53, %p54
      %p56 = scmp.ne.s32.totalorder %s45, %s48
      %p57 = scmp.eq.s32.totalorder %s28, 5
      %p58 = por %p56, %p57
      %p59 = scmp.ne.s32.totalorder %s48, %s49
      %p60 = scmp.eq.s32.totalorder %s28, 0
      %p61 = por %p59, %p60
      %p62 = scmp.ne.s32.totalorder %s48, %s49
      %p63 = scmp.eq.s32.totalorder %s29, 5
      %p64 = por %p62, %p63
      %p66 = scmp.ne.s32.totalorder %s49, %s65
      %p67 = scmp.eq.s32.totalorder %s29, 0
      %p68 = por %p66, %p67
      %s69 = ssub.s32 %s30, %s42
      %p70 = scmp.eq.s32.totalorder %s69, 0
      %s72 = sadd.s32 %s71, 1
      %s73 = scalar_select %p70, %s71, %s72
      %p76 = pneg %p70
      %p77 = scmp.eq.s32.totalorder %s23, 5
      %p78 = por %p76, %p77
      %p79 = scmp.ne.s32.totalorder %s71, %s74
      %p80 = scmp.eq.s32.totalorder %s23, 0
      %p81 = por %p79, %p80
      %p82 = scmp.ne.s32.totalorder %s71, %s74
      %p83 = scmp.eq.s32.totalorder %s28, 5
      %p84 = por %p82, %p83
      %p85 = scmp.ne.s32.totalorder %s74, %s75
      %p86 = scmp.eq.s32.totalorder %s28, 0
      %p87 = por %p85, %p86
      %p88 = scmp.ne.s32.totalorder %s74, %s75
      %p89 = scmp.eq.s32.totalorder %s29, 5
      %p90 = por %p88, %p89
      %p92 = scmp.ne.s32.totalorder %s75, %s91
      %p93 = scmp.eq.s32.totalorder %s29, 0
      %p94 = por %p92, %p93
      %s96 = sadd.s32 %s95, 1
      %p99 = scmp.eq.s32.totalorder %s23, 5
      %p100 = scmp.ne.s32.totalorder %s95, %s97
      %p101 = scmp.eq.s32.totalorder %s23, 0
      %p102 = por %p100, %p101
      %p103 = scmp.ne.s32.totalorder %s95, %s97
      %p104 = scmp.eq.s32.totalorder %s28, 5
      %p105 = por %p103, %p104
      %p106 = scmp.ne.s32.totalorder %s97, %s98
      %p107 = scmp.eq.s32.totalorder %s28, 0
      %p108 = por %p106, %p107
      %p109 = scmp.ne.s32.totalorder %s97, %s98
      %p110 = scmp.eq.s32.totalorder %s29, 5
      %p111 = por %p109, %p110
      %p113 = scmp.ne.s32.totalorder %s98, %s112
      %p114 = scmp.eq.s32.totalorder %s29, 0
      %p115 = por %p113, %p114
      %s117 = sadd.s32 %s116, 1
      %p120 = scmp.eq.s32.totalorder %s23, 5
      %p121 = scmp.ne.s32.totalorder %s116, %s118
      %p122 = scmp.eq.s32.totalorder %s23, 0
      %p123 = por %p121, %p122
      %p124 = scmp.ne.s32.totalorder %s116, %s118
      %p125 = scmp.eq.s32.totalorder %s28, 5
      %p126 = por %p124, %p125
      %p127 = scmp.ne.s32.totalorder %s118, %s119
      %p128 = scmp.eq.s32.totalorder %s28, 0
      %p129 = por %p127, %p128
      %p130 = scmp.ne.s32.totalorder %s118, %s119
      %p131 = scmp.eq.s32.totalorder %s29, 5
      %p132 = por %p130, %p131
      %p134 = scmp.ne.s32.totalorder %s119, %s133
      %p135 = scmp.eq.s32.totalorder %s29, 0
      %p136 = por %p134, %p135
      %s137 = ssub.s32 %s31, %s38
      %p138 = scmp.eq.s32.totalorder %s137, 0
      %s140 = sadd.s32 %s139, 1
      %s141 = scalar_select %p138, %s139, %s140
      %p144 = pneg %p138
      %p145 = scmp.eq.s32.totalorder %s23, 5
      %p146 = por %p144, %p145
      %p147 = scmp.ne.s32.totalorder %s139, %s142
      %p148 = scmp.eq.s32.totalorder %s23, 0
      %p149 = por %p147, %p148
      %p150 = scmp.ne.s32.totalorder %s139, %s142
      %p151 = scmp.eq.s32.totalorder %s28, 5
      %p152 = por %p150, %p151
      %p153 = scmp.ne.s32.totalorder %s142, %s143
      %p154 = scmp.eq.s32.totalorder %s28, 0
      %p155 = por %p153, %p154
      %p156 = scmp.ne.s32.totalorder %s142, %s143
      %p157 = scmp.eq.s32.totalorder %s29, 5
      %p158 = por %p156, %p157
      %p160 = scmp.ne.s32.totalorder %s143, %s159
      %p161 = scmp.eq.s32.totalorder %s29, 0
      %p162 = por %p160, %p161
      %s164 = sadd.s32 %s163, 1
      %p167 = scmp.eq.s32.totalorder %s23, 5
      %p168 = scmp.ne.s32.totalorder %s163, %s165
      %p169 = scmp.eq.s32.totalorder %s23, 0
      %p170 = por %p168, %p169
      %p171 = scmp.ne.s32.totalorder %s163, %s165
      %p172 = scmp.eq.s32.totalorder %s28, 5
      %p173 = por %p171, %p172
      %p174 = scmp.ne.s32.totalorder %s165, %s166
      %p175 = scmp.eq.s32.totalorder %s28, 0
      %p176 = por %p174, %p175
      %p177 = scmp.ne.s32.totalorder %s165, %s166
      %p178 = scmp.eq.s32.totalorder %s29, 5
      %p179 = por %p177, %p178
      %p181 = scmp.ne.s32.totalorder %s166, %s180
      %p182 = scmp.eq.s32.totalorder %s29, 0
      %p183 = por %p181, %p182
      %s184 = ssub.s32 %s31, %s38
      %p185 = scmp.eq.s32.totalorder %s184, 0
      %s187 = sadd.s32 %s186, 1
      %s188 = scalar_select %p185, %s186, %s187
      %p191 = pneg %p185
      %p192 = scmp.eq.s32.totalorder %s23, 5
      %p193 = por %p191, %p192
      %p194 = scmp.ne.s32.totalorder %s186, %s189
      %p195 = scmp.eq.s32.totalorder %s23, 0
      %p196 = por %p194, %p195
      %p197 = scmp.ne.s32.totalorder %s186, %s189
      %p198 = scmp.eq.s32.totalorder %s28, 5
      %p199 = por %p197, %p198
      %p200 = scmp.ne.s32.totalorder %s189, %s190
      %p201 = scmp.eq.s32.totalorder %s28, 0
      %p202 = por %p200, %p201
      %p203 = scmp.ne.s32.totalorder %s189, %s190
      %p204 = scmp.eq.s32.totalorder %s29, 5
      %p205 = por %p203, %p204
      %p207 = scmp.ne.s32.totalorder %s190, %s206
      %p208 = scmp.eq.s32.totalorder %s29, 0
      %p209 = por %p207, %p208
      %s210 = ssub.s32 %s30, %s42
      %p211 = scmp.eq.s32.totalorder %s210, 0
      %s213 = sadd.s32 %s212, 1
      %s214 = scalar_select %p211, %s212, %s213
      %p217 = pneg %p211
      %p218 = scmp.eq.s32.totalorder %s23, 5
      %p219 = por %p217, %p218
      %p220 = scmp.ne.s32.totalorder %s212, %s215
      %p221 = scmp.eq.s32.totalorder %s23, 0
      %p222 = por %p220, %p221
      %p223 = scmp.ne.s32.totalorder %s212, %s215
      %p224 = scmp.eq.s32.totalorder %s28, 5
      %p225 = por %p223, %p224
      %p226 = scmp.ne.s32.totalorder %s215, %s216
      %p227 = scmp.eq.s32.totalorder %s28, 0
      %p228 = por %p226, %p227
      %p229 = scmp.ne.s32.totalorder %s215, %s216
      %p230 = scmp.eq.s32.totalorder %s29, 5
      %p231 = por %p229, %p230
      %p233 = scmp.ne.s32.totalorder %s216, %s232
      %p234 = scmp.eq.s32.totalorder %s29, 0
      %p235 = por %p233, %p234
      %p236 = scmp.le.s32.totalorder 1, %s23
      %p237 = scmp.lt.s32.totalorder %s23, 7
      %p238 = pnand %p236, %p237
      %p239 = pneg %p238
      // Predicated region
      $region9: #{tpu_custom_call.1} parent=5 // pred_check
        _
      $region10: #{tpu_custom_call.1} parent=5 // pred_check_branch
        %241 = sbr.rel (%p238) target = $region12
      $region11: #{tpu_custom_call.1} parent=5 // pred_region
        %s242 = ssub.s32 %s23, 1
        // Predicated region
        $region13: #{tpu_custom_call.1} parent=11 // pred_check
          %p243 = pneg %p108
        $region14: #{tpu_custom_call.1} parent=11 // pred_check_branch
          %245 = sbr.rel (%p243) target = $region16
        $region15: #{tpu_custom_call.1} parent=11 // pred_region
          _
        $region16: #{tpu_custom_call.1} parent=11 // pred_fallthru
          _
        // Predicated region
        $region17: #{tpu_custom_call.1} parent=11 // pred_check
          %p246 = pneg %p129
        $region18: #{tpu_custom_call.1} parent=11 // pred_check_branch
          %248 = sbr.rel (%p246) target = $region20
        $region19: #{tpu_custom_call.1} parent=11 // pred_region
          _
        $region20: #{tpu_custom_call.1} parent=11 // pred_fallthru
          _
        // Predicated region
        $region21: #{tpu_custom_call.1} parent=11 // pred_check
          %p249 = pneg %p176
        $region22: #{tpu_custom_call.1} parent=11 // pred_check_branch
          %251 = sbr.rel (%p249) target = $region24
        $region23: #{tpu_custom_call.1} parent=11 // pred_region
          %s253 = ssub.s32 2048, 2048
          %254 = vsyncadd [#allocation11], %s253
          %s255 = sshll.u32 [#allocation10], 4
          %s256 = int_to_ptr.vmem [resolvable:$true] %s255
          %261 = dma.hbm_to_vmem [thread:$0]  %s5, 2048, %s256, [#allocation11], 128, 128, 8
        $region24: #{tpu_custom_call.1} parent=11 // pred_fallthru
          _
      $region12: #{tpu_custom_call.1} parent=5 // pred_fallthru
        _
      %p262 = scmp.lt.s32.totalorder %s23, 6
      // Predicated region
      $region25: #{tpu_custom_call.1} parent=5 // pred_check
        %p263 = pneg %p262
      $region26: #{tpu_custom_call.1} parent=5 // pred_check_branch
        %265 = sbr.rel (%p263) target = $region28
      $region27: #{tpu_custom_call.1} parent=5 // pred_region
        // Predicated region
        $region29: #{tpu_custom_call.1} parent=27 // pred_check
          %p266 = pneg %p55
        $region30: #{tpu_custom_call.1} parent=27 // pred_check_branch
          %268 = sbr.rel (%p266) target = $region32
        $region31: #{tpu_custom_call.1} parent=27 // pred_region
          %s269 = sand.u32 %s23, 1
          %s270 = scalar_lea.sflag [#allocation5], %s269
          %s271 = sand.u32 %s45, 1
          %s272 = smul.addr %s271, 32
          %s273 = scalar_lea.vmem [#allocation4], %s272
          %s274 = smul.u32 4, %s30
          %s276 = ssub.s32 512, 512
          %277 = vsyncadd %s270, %s276
          %s278 = smul.addr %s274, 128
          %s279 = scalar_lea.hbm %s0, %s278
          %s280 = sshll.u32 %s273, 4
          %s281 = int_to_ptr.vmem [resolvable:$true] %s280
          %286 = dma.hbm_to_vmem [thread:$0]  %s279, 512, %s281, %s270, 128, 128, 8
        $region32: #{tpu_custom_call.1} parent=27 // pred_fallthru
          _
        // Predicated region
        $region33: #{tpu_custom_call.1} parent=27 // pred_check
          %p287 = pneg %p81
        $region34: #{tpu_custom_call.1} parent=27 // pred_check_branch
          %289 = sbr.rel (%p287) target = $region36
        $region35: #{tpu_custom_call.1} parent=27 // pred_region
          %s290 = sand.u32 %s23, 1
          %s291 = scalar_lea.sflag [#allocation8], %s290
          %s292 = sand.u32 %s71, 1
          %s293 = smul.addr %s292, 32
          %s294 = scalar_lea.vmem [#allocation7], %s293
          %s295 = smul.u32 4, %s30
          %s297 = ssub.s32 512, 512
          %298 = vsyncadd %s291, %s297
          %s299 = smul.addr %s295, 128
          %s300 = scalar_lea.hbm %s1, %s299
          %s301 = sshll.u32 %s294, 4
          %s302 = int_to_ptr.vmem [resolvable:$true] %s301
          %307 = dma.hbm_to_vmem [thread:$0]  %s300, 512, %s302, %s291, 128, 128, 8
        $region36: #{tpu_custom_call.1} parent=27 // pred_fallthru
          _
        // Predicated region
        $region37: #{tpu_custom_call.1} parent=27 // pred_check
          %p308 = pneg %p149
        $region38: #{tpu_custom_call.1} parent=27 // pred_check_branch
          %310 = sbr.rel (%p308) target = $region40
        $region39: #{tpu_custom_call.1} parent=27 // pred_region
          %s311 = sand.u32 %s23, 1
          %s312 = scalar_lea.sflag [#allocation8], %s311
          %s313 = sand.u32 %s139, 1
          %s314 = smul.addr %s313, 128
          %s315 = scalar_lea.vmem [#allocation9], %s314
          %s317 = ssub.s32 2048, 2048
          %318 = vsyncadd %s312, %s317
          %s319 = smul.addr %s31, 128
          %s320 = scalar_lea.hbm %s4, %s319
          %s321 = sshll.u32 %s315, 4
          %s322 = int_to_ptr.vmem [resolvable:$true] %s321
          %327 = dma.hbm_to_vmem [thread:$0]  %s320, 2048, %s322, %s312, 384, 128, 8
        $region40: #{tpu_custom_call.1} parent=27 // pred_fallthru
          _
        // Predicated region
        $region41: #{tpu_custom_call.1} parent=27 // pred_check
          %p328 = pneg %p196
        $region42: #{tpu_custom_call.1} parent=27 // pred_check_branch
          %330 = sbr.rel (%p328) target = $region44
        $region43: #{tpu_custom_call.1} parent=27 // pred_region
          %s331 = sand.u32 %s23, 1
          %s332 = scalar_lea.sflag [#allocation5], %s331
          %s333 = sand.u32 %s186, 1
          %s334 = smul.addr %s333, 128
          %s335 = scalar_lea.vmem [#allocation12], %s334
          %s336 = smul.u32 16, %s31
          %s338 = ssub.s32 2048, 2048
          %339 = vsyncadd %s332, %s338
          %s340 = smul.addr %s336, 128
          %s341 = scalar_lea.hbm %s6, %s340
          %s342 = sshll.u32 %s335, 4
          %s343 = int_to_ptr.vmem [resolvable:$true] %s342
          %348 = dma.hbm_to_vmem [thread:$0]  %s341, 2048, %s343, %s332, 128, 128, 8
        $region44: #{tpu_custom_call.1} parent=27 // pred_fallthru
          _
      $region28: #{tpu_custom_call.1} parent=5 // pred_fallthru
        _
      %p349 = scmp.le.s32.totalorder 1, %s23
      %p350 = scmp.lt.s32.totalorder %s23, 7
      %p351 = pnand %p349, %p350
      %p352 = pneg %p351
      // Predicated region
      $region45: #{tpu_custom_call.1} parent=5 // pred_check
        _
      $region46: #{tpu_custom_call.1} parent=5 // pred_check_branch
        %354 = sbr.rel (%p351) target = $region48
      $region47: #{tpu_custom_call.1} parent=5 // pred_region
        %s355 = ssub.s32 %s23, 1
        %s356 = sand.u32 %s28, 1
        %s357 = scalar_lea.sflag [#allocation5], %s356
        %s358 = sand.u32 %s48, 1
        %s359 = smul.addr %s358, 32
        %s360 = scalar_lea.vmem [#allocation4], %s359
        // Predicated region
        $region49: #{tpu_custom_call.1} parent=47 // pred_check
          %p361 = pneg %p61
        $region50: #{tpu_custom_call.1} parent=47 // pred_check_branch
          %363 = sbr.rel (%p361) target = $region52
        $region51: #{tpu_custom_call.1} parent=47 // pred_region
          %364 = dma.done %s357, 512
        $region52: #{tpu_custom_call.1} parent=47 // pred_fallthru
          _
        %s365 = sand.u32 %s28, 1
        %s366 = scalar_lea.sflag [#allocation8], %s365
        %s367 = sand.u32 %s74, 1
        %s368 = smul.addr %s367, 32
        %s369 = scalar_lea.vmem [#allocation7], %s368
        // Predicated region
        $region53: #{tpu_custom_call.1} parent=47 // pred_check
          %p370 = pneg %p87
        $region54: #{tpu_custom_call.1} parent=47 // pred_check_branch
          %372 = sbr.rel (%p370) target = $region56
        $region55: #{tpu_custom_call.1} parent=47 // pred_region
          %373 = dma.done %s366, 512
        $region56: #{tpu_custom_call.1} parent=47 // pred_fallthru
          _
        %s374 = sand.u32 %s28, 1
        %s375 = scalar_lea.sflag [#allocation8], %s374
        %s376 = sand.u32 %s142, 1
        %s377 = smul.addr %s376, 128
        %s378 = scalar_lea.vmem [#allocation9], %s377
        // Predicated region
        $region57: #{tpu_custom_call.1} parent=47 // pred_check
          %p379 = pneg %p155
        $region58: #{tpu_custom_call.1} parent=47 // pred_check_branch
          %381 = sbr.rel (%p379) target = $region60
        $region59: #{tpu_custom_call.1} parent=47 // pred_region
          %382 = dma.done %s375, 2048
        $region60: #{tpu_custom_call.1} parent=47 // pred_fallthru
          _
        // Predicated region
        $region61: #{tpu_custom_call.1} parent=47 // pred_check
          %p383 = pneg %p176
        $region62: #{tpu_custom_call.1} parent=47 // pred_check_branch
          %385 = sbr.rel (%p383) target = $region64
        $region63: #{tpu_custom_call.1} parent=47 // pred_region
          %386 = dma.done [#allocation11], 2048
        $region64: #{tpu_custom_call.1} parent=47 // pred_fallthru
          _
        %s387 = sand.u32 %s28, 1
        %s388 = scalar_lea.sflag [#allocation5], %s387
        %s389 = sand.u32 %s189, 1
        %s390 = smul.addr %s389, 128
        %s391 = scalar_lea.vmem [#allocation12], %s390
        // Predicated region
        $region65: #{tpu_custom_call.1} parent=47 // pred_check
          %p392 = pneg %p202
        $region66: #{tpu_custom_call.1} parent=47 // pred_check_branch
          %394 = sbr.rel (%p392) target = $region68
        $region67: #{tpu_custom_call.1} parent=47 // pred_region
          %395 = dma.done %s388, 2048
        $region68: #{tpu_custom_call.1} parent=47 // pred_fallthru
          _
        %s396 = sand.u32 %s28, 1
        %s397 = scalar_lea.sflag [#allocation5], %s396
        %s398 = sand.u32 %s48, 1
        %s399 = smul.addr %s398, 32
        %s400 = scalar_lea.vmem [#allocation4], %s399
        %p401 = pneg %p61
        %p402 = pneg %p58
        %s403 = sand.u32 %s28, 1
        %s404 = scalar_lea.sflag [#allocation8], %s403
        %s405 = sand.u32 %s74, 1
        %s406 = smul.addr %s405, 32
        %s407 = scalar_lea.vmem [#allocation7], %s406
        %p408 = pneg %p87
        %p409 = pneg %p84
        %p410 = pneg %p108
        %p411 = pneg %p105
        %p412 = pneg %p129
        %p413 = pneg %p126
        %s414 = sand.u32 %s28, 1
        %s415 = scalar_lea.sflag [#allocation8], %s414
        %s416 = sand.u32 %s142, 1
        %s417 = smul.addr %s416, 128
        %s418 = scalar_lea.vmem [#allocation9], %s417
        %p419 = pneg %p155
        %p420 = pneg %p152
        %p421 = pneg %p176
        %p422 = pneg %p173
        %s423 = sand.u32 %s28, 1
        %s424 = scalar_lea.sflag [#allocation5], %s423
        %s425 = sand.u32 %s189, 1
        %s426 = smul.addr %s425, 128
        %s427 = scalar_lea.vmem [#allocation12], %s426
        %p428 = pneg %p202
        %p429 = pneg %p199
        %p430 = pneg %p228
        %p431 = pneg %p225
        %s432 = sand.u32 %s215, 1
        %s433 = scalar_lea.sflag [#allocation6], %s432
        %s434 = sand.u32 %s215, 1
        %s435 = smul.addr %s434, 32
        %s436 = scalar_lea.vmem [#allocation13], %s435
        %s437 = smul.u32 4, %s32
        %s438 = smul.u32 4, %s32
        %s439 = smul.u32 16, %s33
        %s440 = smul.u32 4, %s32
        %p441 = scmp.eq.s32.totalorder %s33, 0
        // Predicated region
        $region69: #{tpu_custom_call.1} parent=47 // pred_check
          %p442 = pneg %p441
        $region70: #{tpu_custom_call.1} parent=47 // pred_check_branch
          %444 = sbr.rel (%p442) target = $region72
        $region71: #{tpu_custom_call.1} parent=47 // pred_region
          %445 = vst [vmem:[#allocation2] sm:$0xff] 0.0
          %446 = vst [vmem:[#allocation2 + $0x8] sm:$0xff] 0.0
          %447 = vst [vmem:[#allocation2 + $0x10] sm:$0xff] 0.0
          %448 = vst [vmem:[#allocation2 + $0x18] sm:$0xff] 0.0
          %v449 = vld [vmem:[%s360] sm:$0xff]
          %v450 = vld [vmem:[%s360 + $0x8] sm:$0xff]
          %v451 = vld [vmem:[%s360 + $0x10] sm:$0xff]
          %v452 = vld [vmem:[%s360 + $0x18] sm:$0xff]
          %v453 = vld [vmem:[%s369] sm:$0xff]
          %v454 = vld [vmem:[%s369 + $0x8] sm:$0xff]
          %v455 = vld [vmem:[%s369 + $0x10] sm:$0xff]
          %v456 = vld [vmem:[%s369 + $0x18] sm:$0xff]
          %v457 = vsub.f32 %v453, %v449
          %v458 = vsub.f32 %v454, %v450
          %v459 = vsub.f32 %v455, %v451
          %v460 = vsub.f32 %v456, %v452
          %v461 = vld [vmem:[%s2] sm:$0x1]
          %v463 = vlaneseq
          %v464 = vshrl.u32 %v463, 7
          %v465 = vsub.s32 0, %v464
          %v466 = vrot.slane %v461, %v465
          %v468 = vmul.f32 %v457, %v466
          %v469 = vmul.f32 %v458, %v466
          %v470 = vmul.f32 %v459, %v466
          %v471 = vmul.f32 %v460, %v466
          %v472 = vadd.f32 %v449, %v468
          %v473 = vadd.f32 %v450, %v469
          %v474 = vadd.f32 %v451, %v470
          %v475 = vadd.f32 %v452, %v471
          %476 = vst [vmem:[#allocation3] sm:$0xff] %v472
          %477 = vst [vmem:[#allocation3 + $0x8] sm:$0xff] %v473
          %478 = vst [vmem:[#allocation3 + $0x10] sm:$0xff] %v474
          %479 = vst [vmem:[#allocation3 + $0x18] sm:$0xff] %v475
        $region72: #{tpu_custom_call.1} parent=47 // pred_fallthru
          _
        %v480 = vld [vmem:[#allocation3] sm:$0xff]
        %v481 = vld [vmem:[#allocation3 + $0x8] sm:$0xff]
        %v482 = vld [vmem:[#allocation3 + $0x10] sm:$0xff]
        %v483 = vld [vmem:[#allocation3 + $0x18] sm:$0xff]
        %v484 = vld [vmem:[%s378] sm:$0xff]
        %v485 = vld [vmem:[%s378 + $0x8] sm:$0xff]
        %v486 = vld [vmem:[%s378 + $0x10] sm:$0xff]
        %v487 = vld [vmem:[%s378 + $0x18] sm:$0xff]
        %v488 = vld [vmem:[%s378 + $0x20] sm:$0xff]
        %v489 = vld [vmem:[%s378 + $0x28] sm:$0xff]
        %v490 = vld [vmem:[%s378 + $0x30] sm:$0xff]
        %v491 = vld [vmem:[%s378 + $0x38] sm:$0xff]
        %v492 = vld [vmem:[%s378 + $0x40] sm:$0xff]
        %v493 = vld [vmem:[%s378 + $0x48] sm:$0xff]
        %v494 = vld [vmem:[%s378 + $0x50] sm:$0xff]
        %v495 = vld [vmem:[%s378 + $0x58] sm:$0xff]
        %v496 = vld [vmem:[%s378 + $0x60] sm:$0xff]
        %v497 = vld [vmem:[%s378 + $0x68] sm:$0xff]
        %v498 = vld [vmem:[%s378 + $0x70] sm:$0xff]
        %v499 = vld [vmem:[%s378 + $0x78] sm:$0xff]
        %500 = vmatprep.subr.mxu0 0.0
        %501 = vmatpush1.msra.mxu0 %v499
        %502 = vmatprep.subr.mxu0 0.0
        %503 = vmatpush1.msra.mxu0 %v498
        %504 = vmatprep.subr.mxu0 0.0
        %505 = vmatpush1.msra.mxu0 %v497
        %506 = vmatprep.subr.mxu0 0.0
        %507 = vmatpush1.msra.mxu0 %v496
        %508 = vmatprep.subr.mxu0 0.0
        %509 = vmatpush1.msra.mxu0 %v495
        %510 = vmatprep.subr.mxu0 0.0
        %511 = vmatpush1.msra.mxu0 %v494
        %512 = vmatprep.subr.mxu0 0.0
        %513 = vmatpush1.msra.mxu0 %v493
        %514 = vmatprep.subr.mxu0 0.0
        %515 = vmatpush1.msra.mxu0 %v492
        %516 = vmatprep.subr.mxu0 0.0
        %517 = vmatpush1.msra.mxu0 %v491
        %518 = vmatprep.subr.mxu0 0.0
        %519 = vmatpush1.msra.mxu0 %v490
        %520 = vmatprep.subr.mxu0 0.0
        %521 = vmatpush1.msra.mxu0 %v489
        %522 = vmatprep.subr.mxu0 0.0
        %523 = vmatpush1.msra.mxu0 %v488
        %524 = vmatprep.subr.mxu0 0.0
        %525 = vmatpush1.msra.mxu0 %v487
        %526 = vmatprep.subr.mxu0 0.0
        %527 = vmatpush1.msra.mxu0 %v486
        %528 = vmatprep.subr.mxu0 0.0
        %529 = vmatpush1.msra.mxu0 %v485
        %530 = vmatprep.subr.mxu0 0.0
        %531 = vmatpush1.msra.mxu0 %v484
        %532 = vmatprep.subr.mxu0 0.0
        %533 = vmatpush2.msra.mxu0 0.0
        %534 = vmatprep.subr.mxu0 0.0
        %535 = vmatpush2.msra.mxu0 0.0
        %536 = vmatprep.subr.mxu0 0.0
        %537 = vmatpush2.msra.mxu0 0.0
        %538 = vmatprep.subr.mxu0 0.0
        %539 = vmatpush2.msra.mxu0 0.0
        %540 = vmatprep.subr.mxu0 0.0
        %541 = vmatpush2.msra.mxu0 0.0
        %542 = vmatprep.subr.mxu0 0.0
        %543 = vmatpush2.msra.mxu0 0.0
        %544 = vmatprep.subr.mxu0 0.0
        %545 = vmatpush2.msra.mxu0 0.0
        %546 = vmatprep.subr.mxu0 0.0
        %547 = vmatpush2.msra.mxu0 0.0
        %548 = vmatprep.subr.mxu0 0.0
        %549 = vmatpush2.msra.mxu0 0.0
        %550 = vmatprep.subr.mxu0 0.0
        %551 = vmatpush2.msra.mxu0 0.0
        %552 = vmatprep.subr.mxu0 0.0
        %553 = vmatpush2.msra.mxu0 0.0
        %554 = vmatprep.subr.mxu0 0.0
        %555 = vmatpush2.msra.mxu0 0.0
        %556 = vmatprep.subr.mxu0 0.0
        %557 = vmatpush2.msra.mxu0 0.0
        %558 = vmatprep.subr.mxu0 0.0
        %559 = vmatpush2.msra.mxu0 0.0
        %560 = vmatprep.subr.mxu0 0.0
        %561 = vmatpush2.msra.mxu0 0.0
        %562 = vmatprep.subr.mxu0 0.0
        %563 = vmatpush2.msra.mxu0 0.0
        %564 = vmatprep.mubr.f32.mxu0 0.0
        %565 = vmatmul.mubr.f32.gmra.mxu0 %v480
        %v566 = vpop.f32.mrf.mxu0
        %v567 = vadd.f32 0.0, %v566
        %v568 = vpop.f32.mrf.mxu0
        %569 = vmatprep.mubr.f32.mxu0 0.0
        %570 = vmatmul.mubr.f32.gmra.mxu0 %v481
        %v571 = vpop.f32.mrf.mxu0
        %v572 = vadd.f32 0.0, %v571
        %v573 = vpop.f32.mrf.mxu0
        %574 = vmatprep.mubr.f32.mxu0 0.0
        %575 = vmatmul.mubr.f32.gmra.mxu0 %v482
        %v576 = vpop.f32.mrf.mxu0
        %v577 = vadd.f32 0.0, %v576
        %v578 = vpop.f32.mrf.mxu0
        %579 = vmatprep.mubr.f32.mxu0 0.0
        %580 = vmatmul.mubr.f32.gmra.mxu0 %v483
        %v581 = vpop.f32.mrf.mxu0
        %v582 = vadd.f32 0.0, %v581
        %v583 = vpop.f32.mrf.mxu0
        %584 = vdwg.mxu0
        %v585 = vmax.f32 %v567, 0.0
        %v586 = vmax.f32 %v572, 0.0
        %v587 = vmax.f32 %v577, 0.0
        %v588 = vmax.f32 %v582, 0.0
        %v589 = vmul.f32 %v585, %v585
        %v590 = vmul.f32 %v586, %v586
        %v591 = vmul.f32 %v587, %v587
        %v592 = vmul.f32 %v588, %v588
        %v593 = vld [vmem:[#allocation2] sm:$0xff]
        %v594 = vld [vmem:[#allocation2 + $0x8] sm:$0xff]
        %v595 = vld [vmem:[#allocation2 + $0x10] sm:$0xff]
        %v596 = vld [vmem:[#allocation2 + $0x18] sm:$0xff]
        %v597 = vld [vmem:[%s391] sm:$0xff]
        %v598 = vld [vmem:[%s391 + $0x8] sm:$0xff]
        %v599 = vld [vmem:[%s391 + $0x10] sm:$0xff]
        %v600 = vld [vmem:[%s391 + $0x18] sm:$0xff]
        %v601 = vld [vmem:[%s391 + $0x20] sm:$0xff]
        %v602 = vld [vmem:[%s391 + $0x28] sm:$0xff]
        %v603 = vld [vmem:[%s391 + $0x30] sm:$0xff]
        %v604 = vld [vmem:[%s391 + $0x38] sm:$0xff]
        %v605 = vld [vmem:[%s391 + $0x40] sm:$0xff]
        %v606 = vld [vmem:[%s391 + $0x48] sm:$0xff]
        %v607 = vld [vmem:[%s391 + $0x50] sm:$0xff]
        %v608 = vld [vmem:[%s391 + $0x58] sm:$0xff]
        %v609 = vld [vmem:[%s391 + $0x60] sm:$0xff]
        %v610 = vld [vmem:[%s391 + $0x68] sm:$0xff]
        %v611 = vld [vmem:[%s391 + $0x70] sm:$0xff]
        %v612 = vld [vmem:[%s391 + $0x78] sm:$0xff]
        %613 = vmatprep.subr.mxu0 0.0
        %614 = vmatpush1.msra.mxu0 %v612
        %615 = vmatprep.subr.mxu0 0.0
        %616 = vmatpush1.msra.mxu0 %v611
        %617 = vmatprep.subr.mxu0 0.0
        %618 = vmatpush1.msra.mxu0 %v610
        %619 = vmatprep.subr.mxu0 0.0
        %620 = vmatpush1.msra.mxu0 %v609
        %621 = vmatprep.subr.mxu0 0.0
        %622 = vmatpush1.msra.mxu0 %v608
        %623 = vmatprep.subr.mxu0 0.0
        %624 = vmatpush1.msra.mxu0 %v607
        %625 = vmatprep.subr.mxu0 0.0
        %626 = vmatpush1.msra.mxu0 %v606
        %627 = vmatprep.subr.mxu0 0.0
        %628 = vmatpush1.msra.mxu0 %v605
        %629 = vmatprep.subr.mxu0 0.0
        %630 = vmatpush1.msra.mxu0 %v604
        %631 = vmatprep.subr.mxu0 0.0
        %632 = vmatpush1.msra.mxu0 %v603
        %633 = vmatprep.subr.mxu0 0.0
        %634 = vmatpush1.msra.mxu0 %v602
        %635 = vmatprep.subr.mxu0 0.0
        %636 = vmatpush1.msra.mxu0 %v601
        %637 = vmatprep.subr.mxu0 0.0
        %638 = vmatpush1.msra.mxu0 %v600
        %639 = vmatprep.subr.mxu0 0.0
        %640 = vmatpush1.msra.mxu0 %v599
        %641 = vmatprep.subr.mxu0 0.0
        %642 = vmatpush1.msra.mxu0 %v598
        %643 = vmatprep.subr.mxu0 0.0
        %644 = vmatpush1.msra.mxu0 %v597
        %645 = vmatprep.subr.mxu0 0.0
        %646 = vmatpush2.msra.mxu0 0.0
        %647 = vmatprep.subr.mxu0 0.0
        %648 = vmatpush2.msra.mxu0 0.0
        %649 = vmatprep.subr.mxu0 0.0
        %650 = vmatpush2.msra.mxu0 0.0
        %651 = vmatprep.subr.mxu0 0.0
        %652 = vmatpush2.msra.mxu0 0.0
        %653 = vmatprep.subr.mxu0 0.0
        %654 = vmatpush2.msra.mxu0 0.0
        %655 = vmatprep.subr.mxu0 0.0
        %656 = vmatpush2.msra.mxu0 0.0
        %657 = vmatprep.subr.mxu0 0.0
        %658 = vmatpush2.msra.mxu0 0.0
        %659 = vmatprep.subr.mxu0 0.0
        %660 = vmatpush2.msra.mxu0 0.0
        %661 = vmatprep.subr.mxu0 0.0
        %662 = vmatpush2.msra.mxu0 0.0
        %663 = vmatprep.subr.mxu0 0.0
        %664 = vmatpush2.msra.mxu0 0.0
        %665 = vmatprep.subr.mxu0 0.0
        %666 = vmatpush2.msra.mxu0 0.0
        %667 = vmatprep.subr.mxu0 0.0
        %668 = vmatpush2.msra.mxu0 0.0
        %669 = vmatprep.subr.mxu0 0.0
        %670 = vmatpush2.msra.mxu0 0.0
        %671 = vmatprep.subr.mxu0 0.0
        %672 = vmatpush2.msra.mxu0 0.0
        %673 = vmatprep.subr.mxu0 0.0
        %674 = vmatpush2.msra.mxu0 0.0
        %675 = vmatprep.subr.mxu0 0.0
        %676 = vmatpush2.msra.mxu0 0.0
        %677 = vmatprep.mubr.f32.mxu0 0.0
        %678 = vmatmul.mubr.f32.gmra.mxu0 %v589
        %v679 = vpop.f32.mrf.mxu0
        %v680 = vadd.f32 0.0, %v679
        %v681 = vpop.f32.mrf.mxu0
        %682 = vmatprep.mubr.f32.mxu0 0.0
        %683 = vmatmul.mubr.f32.gmra.mxu0 %v590
        %v684 = vpop.f32.mrf.mxu0
        %v685 = vadd.f32 0.0, %v684
        %v686 = vpop.f32.mrf.mxu0
        %687 = vmatprep.mubr.f32.mxu0 0.0
        %688 = vmatmul.mubr.f32.gmra.mxu0 %v591
        %v689 = vpop.f32.mrf.mxu0
        %v690 = vadd.f32 0.0, %v689
        %v691 = vpop.f32.mrf.mxu0
        %692 = vmatprep.mubr.f32.mxu0 0.0
        %693 = vmatmul.mubr.f32.gmra.mxu0 %v592
        %v694 = vpop.f32.mrf.mxu0
        %v695 = vadd.f32 0.0, %v694
        %v696 = vpop.f32.mrf.mxu0
        %697 = vdwg.mxu0
        %v698 = vadd.f32 %v593, %v680
        %v699 = vadd.f32 %v594, %v685
        %v700 = vadd.f32 %v595, %v690
        %v701 = vadd.f32 %v596, %v695
        %702 = vst [vmem:[#allocation2] sm:$0xff] %v698
        %703 = vst [vmem:[#allocation2 + $0x8] sm:$0xff] %v699
        %704 = vst [vmem:[#allocation2 + $0x10] sm:$0xff] %v700
        %705 = vst [vmem:[#allocation2 + $0x18] sm:$0xff] %v701
        %p706 = scmp.eq.s32.totalorder %s33, 2
        // Predicated region
        $region73: #{tpu_custom_call.1} parent=47 // pred_check
          %p707 = pneg %p706
        $region74: #{tpu_custom_call.1} parent=47 // pred_check_branch
          %709 = sbr.rel (%p707) target = $region76
        $region75: #{tpu_custom_call.1} parent=47 // pred_region
          %v710 = vld [vmem:[%s360] sm:$0xff]
          %v711 = vld [vmem:[%s360 + $0x8] sm:$0xff]
          %v712 = vld [vmem:[%s360 + $0x10] sm:$0xff]
          %v713 = vld [vmem:[%s360 + $0x18] sm:$0xff]
          %v714 = vld [vmem:[%s369] sm:$0xff]
          %v715 = vld [vmem:[%s369 + $0x8] sm:$0xff]
          %v716 = vld [vmem:[%s369 + $0x10] sm:$0xff]
          %v717 = vld [vmem:[%s369 + $0x18] sm:$0xff]
          %v718 = vsub.f32 %v714, %v710
          %v719 = vsub.f32 %v715, %v711
          %v720 = vsub.f32 %v716, %v712
          %v721 = vsub.f32 %v717, %v713
          %v722 = vld [vmem:[%s3] sm:$0x1]
          %v724 = vlaneseq
          %v725 = vshrl.u32 %v724, 7
          %v726 = vsub.s32 0, %v725
          %v727 = vrot.slane %v722, %v726
          %v729 = vmul.f32 %v718, %v727
          %v730 = vmul.f32 %v719, %v727
          %v731 = vmul.f32 %v720, %v727
          %v732 = vmul.f32 %v721, %v727
          %v733 = vadd.f32 %v710, %v729
          %v734 = vadd.f32 %v711, %v730
          %v735 = vadd.f32 %v712, %v731
          %v736 = vadd.f32 %v713, %v732
          %v737 = vld [vmem:[#allocation10] sm:$0xff]
          %v738 = vld [vmem:[#allocation10 + $0x8] sm:$0xff]
          %v739 = vld [vmem:[#allocation10 + $0x10] sm:$0xff]
          %v740 = vld [vmem:[#allocation10 + $0x18] sm:$0xff]
          %v741 = vld [vmem:[#allocation10 + $0x20] sm:$0xff]
          %v742 = vld [vmem:[#allocation10 + $0x28] sm:$0xff]
          %v743 = vld [vmem:[#allocation10 + $0x30] sm:$0xff]
          %v744 = vld [vmem:[#allocation10 + $0x38] sm:$0xff]
          %v745 = vld [vmem:[#allocation10 + $0x40] sm:$0xff]
          %v746 = vld [vmem:[#allocation10 + $0x48] sm:$0xff]
          %v747 = vld [vmem:[#allocation10 + $0x50] sm:$0xff]
          %v748 = vld [vmem:[#allocation10 + $0x58] sm:$0xff]
          %v749 = vld [vmem:[#allocation10 + $0x60] sm:$0xff]
          %v750 = vld [vmem:[#allocation10 + $0x68] sm:$0xff]
          %v751 = vld [vmem:[#allocation10 + $0x70] sm:$0xff]
          %v752 = vld [vmem:[#allocation10 + $0x78] sm:$0xff]
          %753 = vmatprep.subr.mxu0 0.0
          %754 = vmatpush1.msra.mxu0 %v752
          %755 = vmatprep.subr.mxu0 0.0
          %756 = vmatpush1.msra.mxu0 %v751
          %757 = vmatprep.subr.mxu0 0.0
          %758 = vmatpush1.msra.mxu0 %v750
          %759 = vmatprep.subr.mxu0 0.0
          %760 = vmatpush1.msra.mxu0 %v749
          %761 = vmatprep.subr.mxu0 0.0
          %762 = vmatpush1.msra.mxu0 %v748
          %763 = vmatprep.subr.mxu0 0.0
          %764 = vmatpush1.msra.mxu0 %v747
          %765 = vmatprep.subr.mxu0 0.0
          %766 = vmatpush1.msra.mxu0 %v746
          %767 = vmatprep.subr.mxu0 0.0
          %768 = vmatpush1.msra.mxu0 %v745
          %769 = vmatprep.subr.mxu0 0.0
          %770 = vmatpush1.msra.mxu0 %v744
          %771 = vmatprep.subr.mxu0 0.0
          %772 = vmatpush1.msra.mxu0 %v743
          %773 = vmatprep.subr.mxu0 0.0
          %774 = vmatpush1.msra.mxu0 %v742
          %775 = vmatprep.subr.mxu0 0.0
          %776 = vmatpush1.msra.mxu0 %v741
          %777 = vmatprep.subr.mxu0 0.0
          %778 = vmatpush1.msra.mxu0 %v740
          %779 = vmatprep.subr.mxu0 0.0
          %780 = vmatpush1.msra.mxu0 %v739
          %781 = vmatprep.subr.mxu0 0.0
          %782 = vmatpush1.msra.mxu0 %v738
          %783 = vmatprep.subr.mxu0 0.0
          %784 = vmatpush1.msra.mxu0 %v737
          %785 = vmatprep.subr.mxu0 0.0
          %786 = vmatpush2.msra.mxu0 0.0
          %787 = vmatprep.subr.mxu0 0.0
          %788 = vmatpush2.msra.mxu0 0.0
          %789 = vmatprep.subr.mxu0 0.0
          %790 = vmatpush2.msra.mxu0 0.0
          %791 = vmatprep.subr.mxu0 0.0
          %792 = vmatpush2.msra.mxu0 0.0
          %793 = vmatprep.subr.mxu0 0.0
          %794 = vmatpush2.msra.mxu0 0.0
          %795 = vmatprep.subr.mxu0 0.0
          %796 = vmatpush2.msra.mxu0 0.0
          %797 = vmatprep.subr.mxu0 0.0
          %798 = vmatpush2.msra.mxu0 0.0
          %799 = vmatprep.subr.mxu0 0.0
          %800 = vmatpush2.msra.mxu0 0.0
          %801 = vmatprep.subr.mxu0 0.0
          %802 = vmatpush2.msra.mxu0 0.0
          %803 = vmatprep.subr.mxu0 0.0
          %804 = vmatpush2.msra.mxu0 0.0
          %805 = vmatprep.subr.mxu0 0.0
          %806 = vmatpush2.msra.mxu0 0.0
          %807 = vmatprep.subr.mxu0 0.0
          %808 = vmatpush2.msra.mxu0 0.0
          %809 = vmatprep.subr.mxu0 0.0
          %810 = vmatpush2.msra.mxu0 0.0
          %811 = vmatprep.subr.mxu0 0.0
          %812 = vmatpush2.msra.mxu0 0.0
          %813 = vmatprep.subr.mxu0 0.0
          %814 = vmatpush2.msra.mxu0 0.0
          %815 = vmatprep.subr.mxu0 0.0
          %816 = vmatpush2.msra.mxu0 0.0
          %817 = vmatprep.mubr.f32.mxu0 0.0
          %818 = vmatmul.mubr.f32.gmra.mxu0 %v733
          %v819 = vpop.f32.mrf.mxu0
          %v820 = vadd.f32 0.0, %v819
          %v821 = vpop.f32.mrf.mxu0
          %822 = vmatprep.mubr.f32.mxu0 0.0
          %823 = vmatmul.mubr.f32.gmra.mxu0 %v734
          %v824 = vpop.f32.mrf.mxu0
          %v825 = vadd.f32 0.0, %v824
          %v826 = vpop.f32.mrf.mxu0
          %827 = vmatprep.mubr.f32.mxu0 0.0
          %828 = vmatmul.mubr.f32.gmra.mxu0 %v735
          %v829 = vpop.f32.mrf.mxu0
          %v830 = vadd.f32 0.0, %v829
          %v831 = vpop.f32.mrf.mxu0
          %832 = vmatprep.mubr.f32.mxu0 0.0
          %833 = vmatmul.mubr.f32.gmra.mxu0 %v736
          %v834 = vpop.f32.mrf.mxu0
          %v835 = vadd.f32 0.0, %v834
          %v836 = vpop.f32.mrf.mxu0
          %837 = vdwg.mxu0
          %v838 = vxor.u32 %v820, 2147483648
          %v839 = vxor.u32 %v825, 2147483648
          %v840 = vxor.u32 %v830, 2147483648
          %v841 = vxor.u32 %v835, 2147483648
          %v842 = vmul.f32 %v838, 1.442695
          %v843 = vpow.pop %v842
          %v844 = vmul.f32 %v839, 1.442695
          %v845 = vpow.pop %v844
          %v846 = vmul.f32 %v840, 1.442695
          %v847 = vpow.pop %v846
          %v848 = vmul.f32 %v841, 1.442695
          %v849 = vpow.pop %v848
          %v850 = vadd.f32 %v843, 1.0
          %v851 = vadd.f32 %v845, 1.0
          %v852 = vadd.f32 %v847, 1.0
          %v853 = vadd.f32 %v849, 1.0
          %v854 = vrcp.pop %v850
          %v855 = vmul.f32 1.0, %v854
          %v856 = vrcp.pop %v851
          %v857 = vmul.f32 1.0, %v856
          %v858 = vrcp.pop %v852
          %v859 = vmul.f32 1.0, %v858
          %v860 = vrcp.pop %v853
          %v861 = vmul.f32 1.0, %v860
          %v862 = vld [vmem:[#allocation2] sm:$0xff]
          %v863 = vld [vmem:[#allocation2 + $0x8] sm:$0xff]
          %v864 = vld [vmem:[#allocation2 + $0x10] sm:$0xff]
          %v865 = vld [vmem:[#allocation2 + $0x18] sm:$0xff]
          %v866 = vmul.f32 %v855, %v862
          %v867 = vmul.f32 %v857, %v863
          %v868 = vmul.f32 %v859, %v864
          %v869 = vmul.f32 %v861, %v865
          %870 = vst [vmem:[%s436] sm:$0xff] %v866
          %871 = vst [vmem:[%s436 + $0x8] sm:$0xff] %v867
          %872 = vst [vmem:[%s436 + $0x10] sm:$0xff] %v868
          %873 = vst [vmem:[%s436 + $0x18] sm:$0xff] %v869
        $region76: #{tpu_custom_call.1} parent=47 // pred_fallthru
          _
        %s874 = sand.u32 %s215, 1
        %s875 = scalar_lea.sflag [#allocation6], %s874
        %s876 = sand.u32 %s215, 1
        %s877 = smul.addr %s876, 32
        %s878 = scalar_lea.vmem [#allocation13], %s877
        // Predicated region
        $region77: #{tpu_custom_call.1} parent=47 // pred_check
          %p879 = pneg %p225
        $region78: #{tpu_custom_call.1} parent=47 // pred_check_branch
          %881 = sbr.rel (%p879) target = $region80
        $region79: #{tpu_custom_call.1} parent=47 // pred_region
          %s882 = smul.u32 4, %s32
          %s884 = ssub.s32 512, 512
          %885 = vsyncadd %s875, %s884
          %s886 = smul.addr %s882, 128
          %s887 = scalar_lea.hbm %s7, %s886
          %s888 = sshll.u32 %s878, 4
          %s889 = int_to_ptr.vmem [resolvable:$true] %s888
          %894 = dma.vmem_to_hbm [thread:$0]  %s889, 512, %s887, %s875, 128, 128, 8
        $region80: #{tpu_custom_call.1} parent=47 // pred_fallthru
          _
      $region48: #{tpu_custom_call.1} parent=5 // pred_fallthru
        _
      %p895 = scmp.le.s32.totalorder 2, %s23
      // Predicated region
      $region81: #{tpu_custom_call.1} parent=5 // pred_check
        %p896 = pneg %p895
      $region82: #{tpu_custom_call.1} parent=5 // pred_check_branch
        %898 = sbr.rel (%p896) target = $region84
      $region83: #{tpu_custom_call.1} parent=5 // pred_region
        %s899 = ssub.s32 %s23, 2
        // Predicated region
        $region85: #{tpu_custom_call.1} parent=83 // pred_check
          %p900 = pneg %p231
        $region86: #{tpu_custom_call.1} parent=83 // pred_check_branch
          %902 = sbr.rel (%p900) target = $region88
        $region87: #{tpu_custom_call.1} parent=83 // pred_region
          %s903 = sand.u32 %s216, 1
          %s904 = scalar_lea.sflag [#allocation6], %s903
          %s905 = sand.u32 %s216, 1
          %s906 = smul.addr %s905, 32
          %s907 = scalar_lea.vmem [#allocation13], %s906
          %908 = dma.done %s904, 512
        $region88: #{tpu_custom_call.1} parent=83 // pred_fallthru
          _
      $region84: #{tpu_custom_call.1} parent=5 // pred_fallthru
        _
    $region6: #{tpu_custom_call.1} parent=1 // loop_footer
      %s27 = sadd.s32 1, %s23
    $region7: #{tpu_custom_call.1} parent=1 // loop_footer_branch
      %22 = sbr.rel target = $region3
    $region8: #{tpu_custom_call.1} parent=1 // loop_exit
      _
    %909 = vsyncpa [#allocation5], 1
    %s910 = scalar_lea.sflag [#allocation5], 1
    %911 = vsyncpa %s910, 1
    %912 = vsyncpa [#allocation8], 1
    %s913 = scalar_lea.sflag [#allocation8], 1
    %914 = vsyncpa %s913, 1
    %915 = vsyncpa [#allocation11], 1
    %916 = vsyncpa [#allocation6], 1
    %s917 = scalar_lea.sflag [#allocation6], 1
    %918 = vsyncpa %s917, 1

</llo_original>
